<compile_context>
chip_gen: v6e
topology: v6e:2x2x1
jax: 0.10.0
libtpu: 0.0.40
codegen_flags: <defaults>
</compile_context>

<pallas_src>
import functools

import jax
import jax.numpy as jnp
from jax import lax
from jax.experimental import pallas as pl
from jax.experimental.pallas import tpu as pltpu


LANE = 128


def _round_up(x: int, m: int) -> int:
    return (x + m - 1) // m * m


def _tpu_budgets():
    """(vmem_limit_bytes, per-tile byte budget), generation-aware."""
    try:
        phys = int(pltpu.get_tpu_info().vmem_capacity_bytes)
    except Exception:          # interpret mode / unknown chip -> conservative
        phys = 64 * 1024 * 1024
    # ~75% of physical VMEM as the scoped limit (48 MiB on v7x, 96 MiB v5e/v6e).
    vmem_limit = min((phys * 3) // 4, 96 * 1024 * 1024)
    # Pass 2 holds 2 input + 2 output tile buffers -> keep generous headroom.
    tile_budget = max(1 << 20, min(8 * 1024 * 1024, vmem_limit // 6))
    return vmem_limit, tile_budget


def _bilinear_matrix(n_in: int, n_out: int) -> jnp.ndarray:
    """Interpolation matrix M (n_out, n_in) for nn.Upsample(scale_factor=2,
    mode='bilinear', align_corners=True): out_row = M @ in_row."""
    if n_in == 1:
        return jnp.ones((n_out, 1), jnp.float32)
    src = jnp.arange(n_out, dtype=jnp.float32) * (n_in - 1) / (n_out - 1)
    i0 = jnp.clip(jnp.floor(src).astype(jnp.int32), 0, n_in - 1)
    i1 = jnp.minimum(i0 + 1, n_in - 1)
    frac = src - i0.astype(jnp.float32)
    oh0 = jax.nn.one_hot(i0, n_in, dtype=jnp.float32)
    oh1 = jax.nn.one_hot(i1, n_in, dtype=jnp.float32)
    return (1.0 - frac)[:, None] * oh0 + frac[:, None] * oh1


# ---------------------------------------------------------------------------
# Pass 1 ("squeeze"): tiled spatial sum of low -> per-(batch, split) partial
# sums (f32).  Grid = (B, nsplit, tiles_per_split); the innermost tile axis is
# the sequential reduction ("arbitrary") accumulated in a tiny VMEM scratch.
# The ragged last tile (and any phantom tile created by the 2-way split) is
# masked with its intended global lane offset; the hot path has no mask work.
# ---------------------------------------------------------------------------
def _squeeze_kernel(low_ref, out_ref, acc_ref, *, ts, tiles_per_split, hw):
    s, t = pl.program_id(1), pl.program_id(2)

    @pl.when(t == 0)
    def _():
        acc_ref[...] = jnp.zeros_like(acc_ref)

    x = low_ref[0].astype(jnp.float32)               # (Cl, TS)
    start = (s * tiles_per_split + t) * ts           # intended global lane offset

    @pl.when(start + ts <= hw)                       # hot path: full tile
    def _():
        acc_ref[...] += jnp.sum(x, axis=1, keepdims=True)

    @pl.when(start + ts > hw)                        # ragged last / phantom tile
    def _():
        pos = lax.broadcasted_iota(jnp.int32, x.shape, 1) + start
        acc_ref[...] += jnp.sum(jnp.where(pos < hw, x, 0.0),
                                axis=1, keepdims=True)

    @pl.when(t == pl.num_programs(2) - 1)
    def _():
        out_ref[0, 0] = acc_ref[...]


# ---------------------------------------------------------------------------
# Pass 2 ("excite"): streaming lane-dense broadcast multiply in the input
# dtype; fully parallel grid.  OOB lanes of the ragged last tile read garbage
# but their output writes are dropped by Pallas, so no masking is needed.
# ---------------------------------------------------------------------------
def _excite_kernel(low_ref, gate_ref, out_ref):
    g = gate_ref[0].astype(out_ref.dtype)            # (Cl, 1)
    out_ref[0] = low_ref[0] * g


def channel_se_layer(low_features, high_features, params):
    """low_features: (B, Cl, H2, W2) NCHW, high_features: (B, Ch, H1, W1) NCHW."""
    B, Cl, H2, W2 = low_features.shape
    _, Ch, H1, W1 = high_features.shape
    HW2 = H2 * W2

    vmem_limit, tile_budget = _tpu_budgets()
    itemsize = jnp.dtype(low_features.dtype).itemsize

    # Bytes-based spatial tiles (multiples of 128 lanes -> unmasked vst), sized
    # so 2 input + 2 output buffers fit the generation-aware VMEM limit.
    if HW2 <= LANE:
        TS = HW2                                      # full-dim block (legal)
    else:
        ts = max(LANE, (tile_budget // max(Cl * itemsize, 1)) // LANE * LANE)
        TS = min(ts, _round_up(HW2, LANE))
    n_tiles = pl.cdiv(HW2, TS)

    # v7x: split the sequential tile axis into two "parallel" halves so both
    # TensorCores stream `low` even at batch 1 (no-op on single-TC v5e/v6e).
    nsplit = 2 if n_tiles >= 2 else 1
    tps = pl.cdiv(n_tiles, nsplit)

    low_f = low_features.reshape(B, Cl, HW2)          # contiguous view: no pad/copy

    def _low_idx(b, s, t):
        # Phantom tiles past n_tiles (odd tile counts under the 2-way split)
        # re-read the last valid block; they are fully masked in the kernel.
        return (b, 0, jnp.minimum(s * tps + t, n_tiles - 1))

    # ---- Pass 1: per-(batch, split) partial spatial sums of low. ----
    partial = pl.pallas_call(
        functools.partial(_squeeze_kernel, ts=TS, tiles_per_split=tps, hw=HW2),
        out_shape=jax.ShapeDtypeStruct((B, nsplit, Cl, 1), jnp.float32),
        grid=(B, nsplit, tps),
        in_specs=[pl.BlockSpec((1, Cl, TS), _low_idx)],
        out_specs=pl.BlockSpec((1, 1, Cl, 1), lambda b, s, t: (b, s, 0, 0)),
        scratch_shapes=[pltpu.VMEM((Cl, 1), jnp.float32)],
        compiler_params=pltpu.CompilerParams(
            dimension_semantics=("parallel", "parallel", "arbitrary"),
            vmem_limit_bytes=vmem_limit),
    )(low_f)
    v_l = partial[..., 0].sum(axis=1)                 # (B, Cl) spatial sums of low

    # ---- Tiny gate math in plain XLA (high is read exactly once from HBM). ----
    # wsp folds the bilinear (align_corners=True) upsample: mean over H2*W2 of
    # up(high) == <high, wsp> / (H2*W2) with wsp = outer(colsum(Uh), colsum(Uw)).
    Uh = _bilinear_matrix(H1, H2)
    Uw = _bilinear_matrix(W1, W2)
    wsp = jnp.sum(Uh, axis=0)[:, None] * jnp.sum(Uw, axis=0)[None, :]  # (H1, W1)
    v_h = jnp.einsum('bchw,hw->bc', high_features.astype(jnp.float32), wsp)

    wconv = params["wconv"].astype(jnp.float32)       # (Cl, Ch+Cl); 1x1 conv, bias=False
    wch, wcl = wconv[:, :Ch], wconv[:, Ch:]            # concat order: [up(high), low]
    squeeze = (v_h @ wch.T + v_l @ wcl.T) * (1.0 / float(HW2))          # (B, Cl)
    h1 = jax.nn.relu(squeeze @ params["w1"].astype(jnp.float32).T
                     + params["b1"].astype(jnp.float32))                # (B, Cred)
    gate = jax.nn.sigmoid(h1 @ params["w2"].astype(jnp.float32).T
                          + params["b2"].astype(jnp.float32))           # (B, Cl)
    gate = gate[:, :, None]                                             # (B, Cl, 1)

    # ---- Pass 2: streaming broadcast-multiply, both grid axes parallel. ----
    out_f = pl.pallas_call(
        _excite_kernel,
        out_shape=jax.ShapeDtypeStruct((B, Cl, HW2), low_features.dtype),
        grid=(B, n_tiles),
        in_specs=[pl.BlockSpec((1, Cl, TS), lambda b, t: (b, 0, t)),
                  pl.BlockSpec((1, Cl, 1), lambda b, t: (b, 0, 0))],
        out_specs=pl.BlockSpec((1, Cl, TS), lambda b, t: (b, 0, t)),
        compiler_params=pltpu.CompilerParams(
            dimension_semantics=("parallel", "parallel"),
            vmem_limit_bytes=vmem_limit),
    )(low_f, gate)

    return out_f.reshape(B, Cl, H2, W2)


def reference_forward(low, high, params):
    """Pure-JAX literal reimplementation of the PyTorch forward (for checking)."""
    B, Cl, H2, W2 = low.shape
    _, Ch, H1, W1 = high.shape
    Uh = _bilinear_matrix(H1, H2)
    Uw = _bilinear_matrix(W1, W2)
    up = jnp.einsum('hH,bcHW,wW->bchw', Uh, high, Uw)
    feats = jnp.concatenate([up, low], axis=1)
    conv = jnp.einsum('oc,bchw->bohw', params["wconv"], feats)
    sq = conv.reshape(B, Cl, -1).mean(axis=2)
    f1 = jax.nn.relu(sq @ params["w1"].T + params["b1"])
    f2 = jax.nn.sigmoid(f1 @ params["w2"].T + params["b2"])
    return low * f2[:, :, None, None]


if __name__ == "__main__":
    B, high_ch, low_ch = 2, 16, 8
    H1 = W1 = 8
    H2, W2 = 2 * H1, 2 * W1          # upsample scale_factor=2
    Cred = low_ch // 2

    key = jax.random.PRNGKey(0)
    k = jax.random.split(key, 7)
    low = jax.random.normal(k[0], (B, low_ch, H2, W2), jnp.float32)
    high = jax.random.normal(k[1], (B, high_ch, H1, W1), jnp.float32)

    # Deterministic synthetic parameters (shapes from ChannelSELayer.__init__).
    params = {
        "wconv": jax.random.normal(k[2], (low_ch, high_ch + low_ch), jnp.float32) * 0.1,
        "w1": jax.random.normal(k[3], (Cred, low_ch), jnp.float32) * 0.3,
        "b1": jax.random.normal(k[4], (Cred,), jnp.float32) * 0.1,
        "w2": jax.random.normal(k[5], (low_ch, Cred), jnp.float32) * 0.3,
        "b2": jax.random.normal(k[6], (low_ch,), jnp.float32) * 0.1,
    }

    # f32 path: exact check against the literal reference.
    out = channel_se_layer(low, high, params)
    jax.block_until_ready(out)
    ref = reference_forward(low, high, params)
    assert out.shape == (B, low_ch, H2, W2)
    err = float(jnp.max(jnp.abs(out - ref)))
    assert jnp.allclose(out, ref, atol=1e-4, rtol=1e-4), err

    # bf16 path: half the HBM bytes on the streaming low/out tensors; the gate
    # math still accumulates in f32.  Loose tolerance (bf16 I/O + bf16 multiply).
    low_bf = low.astype(jnp.bfloat16)
    high_bf = high.astype(jnp.bfloat16)
    out_bf = channel_se_layer(low_bf, high_bf, params)
    jax.block_until_ready(out_bf)
    ref_bf = reference_forward(low_bf.astype(jnp.float32),
                               high_bf.astype(jnp.float32), params)
    assert out_bf.dtype == jnp.bfloat16
    assert jnp.allclose(out_bf.astype(jnp.float32), ref_bf, atol=5e-2, rtol=5e-2)

    print("KERNEL_OK")
</pallas_src>

<mosaic_0001>
module attributes {stable_mosaic.version = 11 : i64} {
  func.func @_squeeze_kernel(%arg0: i32, %arg1: i32, %arg2: i32, %arg3: memref<1x8x256xf32, #tpu.memory_space<vmem>>, %arg4: memref<1x1x8x1xf32, #tpu.memory_space<vmem>>, %arg5: memref<8x1xf32, #tpu.memory_space<vmem>>) attributes {dimension_semantics = [#tpu.dimension_semantics<parallel>, #tpu.dimension_semantics<parallel>, #tpu.dimension_semantics<arbitrary>], iteration_bounds = array<i64: 2, 1, 1>, scalar_prefetch = 0 : i64, scratch_operands = 1 : i64, tpu.core_type = #tpu.core_type<tc>, window_params = [{transform_indices = @transform_0, window_bounds = array<i64: 1, 8, 256>}, {transform_indices = @transform_1, window_bounds = array<i64: 1, 1, 8, 1>}]} {
    %c0_i32 = arith.constant 0 : i32
    %0 = arith.cmpi eq, %arg2, %c0_i32 : i32
    %1 = arith.extui %0 : i1 to i32
    %c0_i32_0 = arith.constant 0 : i32
    %2 = arith.cmpi ne, %1, %c0_i32_0 : i32
    scf.if %2 {
      %cst = arith.constant 0.000000e+00 : f32
      %19 = vector.broadcast %cst : f32 to vector<8x1xf32>
      %c0_11 = arith.constant 0 : index
      %c0_12 = arith.constant 0 : index
      %20 = vector.load %arg5[%c0_11, %c0_12] : memref<8x1xf32, #tpu.memory_space<vmem>>, vector<8x1xf32>
      tpu.vector_store %arg5[%c0_11, %c0_12], %19 {strides = array<i32>} : memref<8x1xf32, #tpu.memory_space<vmem>>, vector<8x1xf32>,
    } else {
    }
    %c0 = arith.constant 0 : index
    %c0_1 = arith.constant 0 : index
    %c0_2 = arith.constant 0 : index
    %3 = vector.load %arg3[%c0, %c0_1, %c0_2] : memref<1x8x256xf32, #tpu.memory_space<vmem>>, vector<1x8x256xf32>
    %4 = vector.shape_cast %3 : vector<1x8x256xf32> to vector<8x256xf32>
    %c1_i32 = arith.constant 1 : i32
    %5 = arith.muli %arg1, %c1_i32 : i32
    %6 = arith.addi %5, %arg2 : i32
    %c256_i32 = arith.constant 256 : i32
    %7 = arith.muli %6, %c256_i32 : i32
    %c256_i32_3 = arith.constant 256 : i32
    %8 = arith.addi %7, %c256_i32_3 : i32
    %c256_i32_4 = arith.constant 256 : i32
    %9 = arith.cmpi sle, %8, %c256_i32_4 : i32
    %10 = arith.extui %9 : i1 to i32
    %c0_i32_5 = arith.constant 0 : i32
    %11 = arith.cmpi ne, %10, %c0_i32_5 : i32
    scf.if %11 {
      %c0_11 = arith.constant 0 : index
      %c0_12 = arith.constant 0 : index
      %19 = vector.load %arg5[%c0_11, %c0_12] : memref<8x1xf32, #tpu.memory_space<vmem>>, vector<8x1xf32>
      %cst = arith.constant dense<0.000000e+00> : vector<8xf32>
      %20 = vector.multi_reduction <add>, %4, %cst [1] : vector<8x256xf32> to vector<8xf32>
      %21 = vector.shape_cast %20 : vector<8xf32> to vector<8x1xf32>
      %22 = arith.addf %19, %21 : vector<8x1xf32>
      %c0_13 = arith.constant 0 : index
      %c0_14 = arith.constant 0 : index
      %23 = vector.load %arg5[%c0_13, %c0_14] : memref<8x1xf32, #tpu.memory_space<vmem>>, vector<8x1xf32>
      tpu.vector_store %arg5[%c0_13, %c0_14], %22 {strides = array<i32>} : memref<8x1xf32, #tpu.memory_space<vmem>>, vector<8x1xf32>,
    } else {
    }
    %c256_i32_6 = arith.constant 256 : i32
    %12 = arith.addi %7, %c256_i32_6 : i32
    %c256_i32_7 = arith.constant 256 : i32
    %13 = arith.cmpi sgt, %12, %c256_i32_7 : i32
    %14 = arith.extui %13 : i1 to i32
    %c0_i32_8 = arith.constant 0 : i32
    %15 = arith.cmpi ne, %14, %c0_i32_8 : i32
    scf.if %15 {
      %19 = tpu.iota {dimensions = array<i32: 1>} : vector<8x256xi32>
      %20 = vector.broadcast %7 : i32 to vector<8x256xi32>
      %21 = arith.addi %19, %20 : vector<8x256xi32>
      %c0_11 = arith.constant 0 : index
      %c0_12 = arith.constant 0 : index
      %22 = vector.load %arg5[%c0_11, %c0_12] : memref<8x1xf32, #tpu.memory_space<vmem>>, vector<8x1xf32>
      %c256_i32_13 = arith.constant 256 : i32
      %23 = vector.broadcast %c256_i32_13 : i32 to vector<8x256xi32>
      %24 = arith.cmpi slt, %21, %23 : vector<8x256xi32>
      %cst = arith.constant 0.000000e+00 : f32
      %25 = vector.broadcast %cst : f32 to vector<8x256xf32>
      %26 = arith.select %24, %4, %25 : vector<8x256xi1>, vector<8x256xf32>
      %cst_14 = arith.constant dense<0.000000e+00> : vector<8xf32>
      %27 = vector.multi_reduction <add>, %26, %cst_14 [1] : vector<8x256xf32> to vector<8xf32>
      %28 = vector.shape_cast %27 : vector<8xf32> to vector<8x1xf32>
      %29 = arith.addf %22, %28 : vector<8x1xf32>
      %c0_15 = arith.constant 0 : index
      %c0_16 = arith.constant 0 : index
      %30 = vector.load %arg5[%c0_15, %c0_16] : memref<8x1xf32, #tpu.memory_space<vmem>>, vector<8x1xf32>
      tpu.vector_store %arg5[%c0_15, %c0_16], %29 {strides = array<i32>} : memref<8x1xf32, #tpu.memory_space<vmem>>, vector<8x1xf32>,
    } else {
    }
    %c0_i32_9 = arith.constant 0 : i32
    %16 = arith.cmpi eq, %arg2, %c0_i32_9 : i32
    %17 = arith.extui %16 : i1 to i32
    %c0_i32_10 = arith.constant 0 : i32
    %18 = arith.cmpi ne, %17, %c0_i32_10 : i32
    scf.if %18 {
      %c0_11 = arith.constant 0 : index
      %c0_12 = arith.constant 0 : index
      %19 = vector.load %arg5[%c0_11, %c0_12] : memref<8x1xf32, #tpu.memory_space<vmem>>, vector<8x1xf32>
      %c0_13 = arith.constant 0 : index
      %c0_14 = arith.constant 0 : index
      %c0_15 = arith.constant 0 : index
      %c0_16 = arith.constant 0 : index
      %20 = vector.load %arg4[%c0_13, %c0_14, %c0_15, %c0_16] : memref<1x1x8x1xf32, #tpu.memory_space<vmem>>, vector<1x1x8x1xf32>
      %21 = vector.shape_cast %20 : vector<1x1x8x1xf32> to vector<8x1xf32>
      %22 = vector.shape_cast %19 : vector<8x1xf32> to vector<1x1x8x1xf32>
      tpu.vector_store %arg4[%c0_13, %c0_14, %c0_15, %c0_16], %22 {strides = array<i32>} : memref<1x1x8x1xf32, #tpu.memory_space<vmem>>, vector<1x1x8x1xf32>,
    } else {
    }
    return
  }
  func.func @transform_0(%arg0: i32, %arg1: i32, %arg2: i32) -> (i32, i32, i32) {
    %c1_i32 = arith.constant 1 : i32
    %0 = arith.muli %arg1, %c1_i32 : i32
    %1 = arith.addi %0, %arg2 : i32
    %c0_i32 = arith.constant 0 : i32
    %2 = arith.minsi %1, %c0_i32 : i32
    %c0_i32_0 = arith.constant 0 : i32
    %c0_i32_1 = arith.constant 0 : i32
    return %arg0, %c0_i32_0, %2 : i32, i32, i32
  }
  func.func @transform_1(%arg0: i32, %arg1: i32, %arg2: i32) -> (i32, i32, i32, i32) {
    %c0_i32 = arith.constant 0 : i32
    %c0_i32_0 = arith.constant 0 : i32
    %c0_i32_1 = arith.constant 0 : i32
    return %arg0, %arg1, %c0_i32, %c0_i32_0 : i32, i32, i32, i32
  }
}

</mosaic_0001>

<llo_original>
// kernel: tpu_custom_call.1
$region0: #{tpu_custom_call.1}
  #allocation0 [shape = 'u32[]', space=smem, size = 0x4, offset = 0x4, fixed_abs, tag = 'smem constant byte address 0x4 - core index']
  #allocation1 [shape = 'u32[144,128]{1,0:T(1,128)}', space=vmem, size = 0x12000, scoped, tag = 'internal scratch']
  #allocation2 [shape = 'f32[8,1]{1,0:T(8,128)}', space=vmem, size = 0x1000, scoped, tag = 'scratch operand']
  %s0 = inlined_call_operand.hbm [shape: f32[2,8,256], index: 0, kind: input, shape index: {}]
  %s1 = inlined_call_operand.vmem [shape: f32[2,1,8,1], index: 1, kind: output, shape index: {}]
  %s2 = sld [smem:[#allocation0]]
  $region57: #{tpu_custom_call.1} parent=0
    _
  %s4 = ssub.s32 1, %s2
  %s5 = scalar_select 0, %s4, %s2
  $region1: #{tpu_custom_call.1} parent=0
    #allocation3 [shape = 'u8[16384]{0}', space=vmem, size = 0x4000, scoped, tag = 'input window, operand 0']
    #allocation4 [shape = 's32[2]{0}', space=sflag, size = 0x8, scoped, tag = 'scoped memory for tpu_custom_call.1']
    %6 = vsyncpa [#allocation4], 0
    %s7 = scalar_lea.sflag [#allocation4], 1
    %8 = vsyncpa %s7, 0
    loop: start=0, step=1, limit=4
    $region2: #{tpu_custom_call.1} parent=1 // loop_pre_header
      _
    $region3: #{tpu_custom_call.1} parent=1 // loop_header
      %s10 = sphi 0, %s14
      %p11 = scmp.ge.s32.totalorder %s10, 4
      %s17 = sphi 0, %s36
      %s18 = sphi 0, %s32
      %s19 = sphi 0, %s28
      %s20 = sphi 0, %s17
      %s21 = sphi 0, %s18
      %s22 = sphi 0, %s19
      %s23 = sphi 0, %s20
      %s24 = sphi 0, %s21
      %s25 = sphi 0, %s22
      %s47 = sphi 0, %s49
      %s50 = sphi 0, %s47
      %s51 = sphi 0, %s50
      %s67 = sphi 0, %s51
      %s75 = sphi 0, %s77
      %s78 = sphi 0, %s75
      %s79 = sphi 0, %s78
      %s95 = sphi 0, %s79
    $region4: #{tpu_custom_call.1} parent=1 // loop_header_branch
      %13 = sbr.rel (%p11) target = $region8
    $region5: #{tpu_custom_call.1} parent=1 // loop_body
      %s15 = ssub.s32 %s10, 1
      %s16 = ssub.s32 %s10, 2
      %s26 = sadd.s32 1, %s19
      %p27 = scmp.ge.s32.totalorder %s26, 1
      %s28 = scalar_select %p27, 0, %s26
      %s29 = sadd.s32 1, %s18
      %s30 = scalar_select %p27, %s29, %s18
      %p31 = scmp.ge.s32.totalorder %s30, 1
      %s32 = scalar_select %p31, 0, %s30
      %s33 = sadd.s32 1, %s17
      %s34 = scalar_select %p31, %s33, %s17
      %p35 = scmp.ge.s32.totalorder %s34, 2
      %s36 = scalar_select %p35, 0, %s34
      %s37 = sadd.s32 %s18, %s19
      %p38 = scmp.lt.s32.totalorder %s37, 0
      %s39 = scalar_select %p38, %s37, 0
      %s40 = sadd.s32 %s32, %s28
      %p41 = scmp.lt.s32.totalorder %s40, 0
      %s42 = scalar_select %p41, %s40, 0
      %s43 = ssub.s32 %s17, %s36
      %s44 = ssub.s32 %s39, %s42
      %s45 = sor.u32 %s43, %s44
      %p46 = scmp.eq.s32.totalorder %s45, 0
      %s48 = sadd.s32 %s47, 1
      %s49 = scalar_select %p46, %s47, %s48
      %p52 = pneg %p46
      %p53 = scmp.eq.s32.totalorder %s10, 1
      %p54 = por %p52, %p53
      %p55 = scmp.ne.s32.totalorder %s47, %s50
      %p56 = scmp.eq.s32.totalorder %s10, 0
      %p57 = por %p55, %p56
      %p58 = scmp.ne.s32.totalorder %s47, %s50
      %p59 = scmp.eq.s32.totalorder %s15, 1
      %p60 = por %p58, %p59
      %p61 = scmp.ne.s32.totalorder %s50, %s51
      %p62 = scmp.eq.s32.totalorder %s15, 0
      %p63 = por %p61, %p62
      %p64 = scmp.ne.s32.totalorder %s50, %s51
      %p65 = scmp.eq.s32.totalorder %s16, 1
      %p66 = por %p64, %p65
      %p68 = scmp.ne.s32.totalorder %s51, %s67
      %p69 = scmp.eq.s32.totalorder %s16, 0
      %p70 = por %p68, %p69
      %s71 = ssub.s32 %s17, %s36
      %s72 = ssub.s32 %s18, %s32
      %s73 = sor.u32 %s71, %s72
      %p74 = scmp.eq.s32.totalorder %s73, 0
      %s76 = sadd.s32 %s75, 1
      %s77 = scalar_select %p74, %s75, %s76
      %p80 = pneg %p74
      %p81 = scmp.eq.s32.totalorder %s10, 1
      %p82 = por %p80, %p81
      %p83 = scmp.ne.s32.totalorder %s75, %s78
      %p84 = scmp.eq.s32.totalorder %s10, 0
      %p85 = por %p83, %p84
      %p86 = scmp.ne.s32.totalorder %s75, %s78
      %p87 = scmp.eq.s32.totalorder %s15, 1
      %p88 = por %p86, %p87
      %p89 = scmp.ne.s32.totalorder %s78, %s79
      %p90 = scmp.eq.s32.totalorder %s15, 0
      %p91 = por %p89, %p90
      %p92 = scmp.ne.s32.totalorder %s78, %s79
      %p93 = scmp.eq.s32.totalorder %s16, 1
      %p94 = por %p92, %p93
      %p96 = scmp.ne.s32.totalorder %s79, %s95
      %p97 = scmp.eq.s32.totalorder %s16, 0
      %p98 = por %p96, %p97
      %p99 = scmp.le.s32.totalorder 1, %s10
      %p100 = scmp.lt.s32.totalorder %s10, 3
      %p101 = pnand %p99, %p100
      %p102 = pneg %p101
      // Predicated region
      $region9: #{tpu_custom_call.1} parent=5 // pred_check
        _
      $region10: #{tpu_custom_call.1} parent=5 // pred_check_branch
        %104 = sbr.rel (%p101) target = $region12
      $region11: #{tpu_custom_call.1} parent=5 // pred_region
        %s105 = ssub.s32 %s10, 1
      $region12: #{tpu_custom_call.1} parent=5 // pred_fallthru
        _
      %p106 = scmp.lt.s32.totalorder %s10, 2
      // Predicated region
      $region13: #{tpu_custom_call.1} parent=5 // pred_check
        %p107 = pneg %p106
      $region14: #{tpu_custom_call.1} parent=5 // pred_check_branch
        %109 = sbr.rel (%p107) target = $region16
      $region15: #{tpu_custom_call.1} parent=5 // pred_region
        // Predicated region
        $region17: #{tpu_custom_call.1} parent=15 // pred_check
          %p110 = pneg %p57
        $region18: #{tpu_custom_call.1} parent=15 // pred_check_branch
          %112 = sbr.rel (%p110) target = $region20
        $region19: #{tpu_custom_call.1} parent=15 // pred_region
          %s113 = sand.u32 %s47, 1
          %s114 = scalar_lea.sflag [#allocation4], %s113
          %s115 = sand.u32 %s47, 1
          %s116 = smul.addr %s115, 16
          %s117 = scalar_lea.vmem [#allocation3], %s116
          %s118 = sadd.s32 %s18, %s19
          %p119 = scmp.lt.s32.totalorder %s118, 0
          %s120 = scalar_select %p119, %s118, 0
          %s121 = smul.u32 2, %s120
          %s123 = ssub.s32 256, 256
          %124 = vsyncadd %s114, %s123
          %s125 = smul.addr %s17, 2
          %s126 = sadd.s32 %s121, %s125
          %s127 = smul.addr %s126, 128
          %s128 = scalar_lea.hbm %s0, %s127
          %s130 = sshll.u32 %s117, 4
          %s131 = int_to_ptr.vmem [resolvable:$true] %s130
          %133 = dma.hbm_to_vmem [thread:$0]  %s128, 256, %s131, %s114
        $region20: #{tpu_custom_call.1} parent=15 // pred_fallthru
          _
      $region16: #{tpu_custom_call.1} parent=5 // pred_fallthru
        _
      %p134 = scmp.le.s32.totalorder 1, %s10
      %p135 = scmp.lt.s32.totalorder %s10, 3
      %p136 = pnand %p134, %p135
      %p137 = pneg %p136
      // Predicated region
      $region21: #{tpu_custom_call.1} parent=5 // pred_check
        _
      $region22: #{tpu_custom_call.1} parent=5 // pred_check_branch
        %139 = sbr.rel (%p136) target = $region24
      $region23: #{tpu_custom_call.1} parent=5 // pred_region
        %s140 = ssub.s32 %s10, 1
        %s141 = sand.u32 %s50, 1
        %s142 = scalar_lea.sflag [#allocation4], %s141
        %s143 = sand.u32 %s50, 1
        %s144 = smul.addr %s143, 16
        %s145 = scalar_lea.vmem [#allocation3], %s144
        // Predicated region
        $region25: #{tpu_custom_call.1} parent=23 // pred_check
          %p146 = pneg %p63
        $region26: #{tpu_custom_call.1} parent=23 // pred_check_branch
          %148 = sbr.rel (%p146) target = $region28
        $region27: #{tpu_custom_call.1} parent=23 // pred_region
          %149 = dma.done %s142, 256
        $region28: #{tpu_custom_call.1} parent=23 // pred_fallthru
          _
        %s150 = sand.u32 %s50, 1
        %s151 = scalar_lea.sflag [#allocation4], %s150
        %s152 = sand.u32 %s50, 1
        %s153 = smul.addr %s152, 16
        %s154 = scalar_lea.vmem [#allocation3], %s153
        %p155 = pneg %p63
        %p156 = pneg %p60
        %p157 = pneg %p91
        %p158 = pneg %p88
        %p159 = scmp.lt.s32.totalorder %s20, 1
        %s160 = scalar_select %p159, %s20, 1
        %p161 = scmp.lt.s32.totalorder %s21, 0
        %s162 = scalar_select %p161, %s21, 0
        %s163 = sadd.s32 %s162, %s160
        %s164 = smul.addr %s163, 8
        %s165 = scalar_lea.vmem %s1, %s164
        %s166 = sadd.s32 %s21, %s22
        %p167 = scmp.lt.s32.totalorder %s166, 0
        %s168 = scalar_select %p167, %s166, 0
        %s169 = smul.u32 2, %s168
        %p170 = scmp.lt.s32.totalorder %s20, 1
        %s171 = scalar_select %p170, %s20, 1
        %p172 = scmp.lt.s32.totalorder %s21, 0
        %s173 = scalar_select %p172, %s21, 0
        %s174 = sadd.s32 %s173, %s171
        %s175 = smul.addr %s174, 8
        %s176 = scalar_lea.vmem %s1, %s175
        %p177 = scmp.eq.s32.totalorder %s22, 0
        // Predicated region
        $region29: #{tpu_custom_call.1} parent=23 // pred_check
          %p178 = pneg %p177
        $region30: #{tpu_custom_call.1} parent=23 // pred_check_branch
          %180 = sbr.rel (%p178) target = $region32
        $region31: #{tpu_custom_call.1} parent=23 // pred_region
          %vm181 = vcmask 7168
          %182 = vst.msk [vmem:[#allocation2] sm:$0xff] %vm181, 0.0
        $region32: #{tpu_custom_call.1} parent=23 // pred_fallthru
          _
        %v183 = vld [vmem:[%s145] sm:$0xff]
        %v184 = vld [vmem:[%s145 + $0x8] sm:$0xff]
        %s185 = sadd.s32 %s21, %s22
        %s186 = smul.u32 %s185, 256
        %s187 = sadd.s32 %s186, 256
        %p188 = scmp.le.s32.totalorder %s187, 256
        // Predicated region
        $region33: #{tpu_custom_call.1} parent=23 // pred_check
          %p189 = pneg %p188
        $region34: #{tpu_custom_call.1} parent=23 // pred_check_branch
          %191 = sbr.rel (%p189) target = $region36
        $region35: #{tpu_custom_call.1} parent=23 // pred_region
          %v192 = vld [vmem:[#allocation2] sm:$0xff]
          %v193 = vadd.f32 %v183, %v184
          %194 = vadd.xlane.f32.xlu0 %v193
          %v195 = vpop.xlane.xlu0 %194
          %v196 = vadd.f32 %v192, %v195
          %vm197 = vcmask 7168
          %198 = vst.msk [vmem:[#allocation2] sm:$0xff] %vm197, %v196
        $region36: #{tpu_custom_call.1} parent=23 // pred_fallthru
          _
        %p199 = scmp.gt.s32.totalorder %s187, 256
        // Predicated region
        $region37: #{tpu_custom_call.1} parent=23 // pred_check
          %p200 = pneg %p199
        $region38: #{tpu_custom_call.1} parent=23 // pred_check_branch
          %202 = sbr.rel (%p200) target = $region40
        $region39: #{tpu_custom_call.1} parent=23 // pred_region
          %v203 = vlaneseq
          %v204 = vand.u32 %v203, 127
          %v205 = vadd.s32 %v204, 128
          %v206 = vstv %s186
          %v207 = vadd.s32 %v204, %v206
          %v208 = vadd.s32 %v205, %v206
          %v209 = vld [vmem:[#allocation2] sm:$0xff]
          %vm210 = vcmp.lt.s32.totalorder %v207, 256
          %vm211 = vcmp.lt.s32.totalorder %v208, 256
          %v212 = vsel %vm210, %v183, 0.0
          %v213 = vsel %vm211, %v184, 0.0
          %v214 = vadd.f32 %v212, %v213
          %215 = vadd.xlane.f32.xlu0 %v214
          %v216 = vpop.xlane.xlu0 %215
          %v217 = vadd.f32 %v209, %v216
          %vm218 = vcmask 7168
          %219 = vst.msk [vmem:[#allocation2] sm:$0xff] %vm218, %v217
        $region40: #{tpu_custom_call.1} parent=23 // pred_fallthru
          _
        // Predicated region
        $region41: #{tpu_custom_call.1} parent=23 // pred_check
          %p220 = pneg %p177
        $region42: #{tpu_custom_call.1} parent=23 // pred_check_branch
          %222 = sbr.rel (%p220) target = $region44
        $region43: #{tpu_custom_call.1} parent=23 // pred_region
          %v223 = vld [vmem:[#allocation2] sm:$0xff]
          %vm224 = vcmask 7168
          %225 = vst.msk [vmem:[%s176] sm:$0xff] %vm224, %v223
        $region44: #{tpu_custom_call.1} parent=23 // pred_fallthru
          _
        %p226 = scmp.lt.s32.totalorder %s20, 1
        %s227 = scalar_select %p226, %s20, 1
        %p228 = scmp.lt.s32.totalorder %s21, 0
        %s229 = scalar_select %p228, %s21, 0
        %s230 = sadd.s32 %s229, %s227
        %s231 = smul.addr %s230, 8
        %s232 = scalar_lea.vmem %s1, %s231
        // Predicated region
        $region45: #{tpu_custom_call.1} parent=23 // pred_check
          %p233 = pneg %p88
        $region46: #{tpu_custom_call.1} parent=23 // pred_check_branch
          %235 = sbr.rel (%p233) target = $region48
        $region47: #{tpu_custom_call.1} parent=23 // pred_region
          _
        $region48: #{tpu_custom_call.1} parent=23 // pred_fallthru
          _
      $region24: #{tpu_custom_call.1} parent=5 // pred_fallthru
        _
      %p236 = scmp.le.s32.totalorder 2, %s10
      // Predicated region
      $region49: #{tpu_custom_call.1} parent=5 // pred_check
        %p237 = pneg %p236
      $region50: #{tpu_custom_call.1} parent=5 // pred_check_branch
        %239 = sbr.rel (%p237) target = $region52
      $region51: #{tpu_custom_call.1} parent=5 // pred_region
        %s240 = ssub.s32 %s10, 2
        // Predicated region
        $region53: #{tpu_custom_call.1} parent=51 // pred_check
          %p241 = pneg %p94
        $region54: #{tpu_custom_call.1} parent=51 // pred_check_branch
          %243 = sbr.rel (%p241) target = $region56
        $region55: #{tpu_custom_call.1} parent=51 // pred_region
          %p244 = scmp.lt.s32.totalorder %s23, 1
          %s245 = scalar_select %p244, %s23, 1
          %p246 = scmp.lt.s32.totalorder %s24, 0
          %s247 = scalar_select %p246, %s24, 0
          %s248 = sadd.s32 %s247, %s245
          %s249 = smul.addr %s248, 8
          %s250 = scalar_lea.vmem %s1, %s249
        $region56: #{tpu_custom_call.1} parent=51 // pred_fallthru
          _
      $region52: #{tpu_custom_call.1} parent=5 // pred_fallthru
        _
    $region6: #{tpu_custom_call.1} parent=1 // loop_footer
      %s14 = sadd.s32 1, %s10
    $region7: #{tpu_custom_call.1} parent=1 // loop_footer_branch
      %9 = sbr.rel target = $region3
    $region8: #{tpu_custom_call.1} parent=1 // loop_exit
      _
    %251 = vsyncpa [#allocation4], 1
    %s252 = scalar_lea.sflag [#allocation4], 1
    %253 = vsyncpa %s252, 1

</llo_original>
